<compile_context>
chip_gen: v6e
topology: v6e:2x2x1
jax: 0.10.0
libtpu: 0.0.40
codegen_flags: <defaults>
</compile_context>

<pallas_src>
import jax
import jax.numpy as jnp
from jax import lax
from jax.experimental import pallas as pl
from jax.experimental.pallas import tpu as pltpu  # noqa: F401  (TPU backend)


# ------------------------------------------------------------------ kernel
def _gcn_edgecat_kernel(nf_ref, ef_ref, ew_ref,
                        src_ref, dst_ref, dst_row_ref,
                        we_src_ref, we_edge_ref, we_dst_ref, be_ref,
                        wn_self_ref, wn_agg_ref, bn_ref,
                        node_out_ref, edge_out_ref):
    f32 = jnp.float32
    bf16 = jnp.bfloat16
    N = nf_ref.shape[0]
    E = ef_ref.shape[0]

    nf = nf_ref[...]                        # (N, H) node features, f32
    ef = ef_ref[...]                        # (E, H) edge features, f32
    nf_b = nf.astype(bf16)

    src_idx = src_ref[...]                  # (E, 1) int32  edge source node
    dst_idx = dst_ref[...]                  # (E, 1) int32  edge dest node
    dst_row = dst_row_ref[...]              # (1, E) int32  edge dest (row layout)

    # ---- build incidence in-kernel (VPU iota + compare), no HBM one-hots.
    # sd_oh[e, c] = 1 if (c <  N and c     == src[e])
    #            or (c >= N and c - N == dst[e])   -> fused [src | dst] gather.
    col2n = lax.broadcasted_iota(jnp.int32, (E, 2 * N), 1)
    sd_oh = jnp.logical_or(col2n == src_idx,
                           col2n == (dst_idx + N)).astype(bf16)      # (E, 2N)
    rowN = lax.broadcasted_iota(jnp.int32, (N, E), 0)
    dstT = (rowN == dst_row)                                         # (N, E) bool

    # ---- msg_fn: m = ReLU([src_nh | eh | dst_nh] @ W_e + b_e)  (W_e pre-split)
    # Project node features once (N rows), then gather per edge on the MXU.
    xs = jnp.dot(nf_b, we_src_ref[...].astype(bf16), preferred_element_type=f32)
    xd = jnp.dot(nf_b, we_dst_ref[...].astype(bf16), preferred_element_type=f32)
    x_sd = jnp.concatenate([xs, xd], axis=0).astype(bf16)            # (2N, H)
    m_lin = (jnp.dot(sd_oh, x_sd, preferred_element_type=f32)        # (E, H)
             + jnp.dot(ef.astype(bf16), we_edge_ref[...].astype(bf16),
                       preferred_element_type=f32))
    # eweight scales the concatenated features before the Linear: (w*x)@W = w*(x@W)
    m_lin = ew_ref[...] * m_lin + be_ref[...]
    m = jnp.maximum(m_lin, 0.0)                                      # (E, H)

    # ---- reduce_fn = fn.mean('m','h'): per-destination mean (0 if isolated)
    h_sum = jnp.dot(dstT.astype(bf16), m.astype(bf16),
                    preferred_element_type=f32)                      # (N, H)
    deg = jnp.sum(dstT.astype(f32), axis=1, keepdims=True)           # (N, 1)
    inv_deg = jnp.where(deg > 0.0,
                        pl.reciprocal(jnp.maximum(deg, 1.0), approx=True),
                        0.0)
    h_mean = h_sum * inv_deg                                         # (N, H)

    # ---- apply_fn: hn = ReLU([nh | h] @ W_n + b_n)  (W_n pre-split)
    hn_lin = (jnp.dot(nf_b, wn_self_ref[...].astype(bf16),
                      preferred_element_type=f32)
              + jnp.dot(h_mean.astype(bf16), wn_agg_ref[...].astype(bf16),
                        preferred_element_type=f32)
              + bn_ref[...])
    hn = jnp.maximum(hn_lin, 0.0)                                    # (N, H)

    # ---- residual connections
    node_out_ref[...] = hn + nf
    edge_out_ref[...] = m + ef


# ----------------------------------------------------------------- wrapper
def gcn_layer_edgecat(params, nfeats, efeats, src, dst, eweight=None):
    nfeats = jnp.asarray(nfeats, jnp.float32)
    efeats = jnp.asarray(efeats, jnp.float32)
    N, H = nfeats.shape
    E = efeats.shape[0]

    src_col = jnp.asarray(src, jnp.int32).reshape(E, 1)
    dst_col = jnp.asarray(dst, jnp.int32).reshape(E, 1)
    dst_row = jnp.asarray(dst, jnp.int32).reshape(1, E)

    ew = (jnp.ones((E, 1), jnp.float32) if eweight is None
          else jnp.asarray(eweight, jnp.float32).reshape(E, 1))

    node_out, edge_out = pl.pallas_call(
        _gcn_edgecat_kernel,
        out_shape=(jax.ShapeDtypeStruct((N, H), jnp.float32),
                   jax.ShapeDtypeStruct((E, H), jnp.float32)),
    )(nfeats, efeats, ew, src_col, dst_col, dst_row,
      params["w_e_src"], params["w_e_edge"], params["w_e_dst"],
      params["b_e"].reshape(1, H),
      params["w_n_self"], params["w_n_agg"], params["b_n"].reshape(1, H))
    return node_out, edge_out


# ----------------------------------------------------------------- params
def init_params(key, hidden_dim):
    ks = jax.random.split(key, 7)
    s = 0.1

    def nrm(k, shape):
        return s * jax.random.normal(k, shape, jnp.float32)

    return {
        # eW: Linear(3H, H) stored [in, out], split along the concat axis
        # [src_nh | eh | dst_nh]
        "w_e_src": nrm(ks[0], (hidden_dim, hidden_dim)),
        "w_e_edge": nrm(ks[1], (hidden_dim, hidden_dim)),
        "w_e_dst": nrm(ks[2], (hidden_dim, hidden_dim)),
        "b_e": nrm(ks[3], (hidden_dim,)),
        # nW: Linear(2H, H) split along the concat axis [nh | h]
        "w_n_self": nrm(ks[4], (hidden_dim, hidden_dim)),
        "w_n_agg": nrm(ks[5], (hidden_dim, hidden_dim)),
        "b_n": nrm(ks[6], (hidden_dim,)),
    }


# ----------------------------------------------- pure-JAX f32 reference
def reference_forward(params, nfeats, efeats, src, dst, eweight=None):
    N, H = nfeats.shape
    src_nh = nfeats[src]
    dst_nh = nfeats[dst]
    eh = jnp.concatenate([src_nh, efeats, dst_nh], axis=-1)          # (E, 3H)
    if eweight is not None:
        eh = eh * eweight[:, None]
    W_e = jnp.concatenate(
        [params["w_e_src"], params["w_e_edge"], params["w_e_dst"]], axis=0)
    m = jax.nn.relu(eh @ W_e + params["b_e"])                        # (E, H)
    h_sum = jnp.zeros((N, H), jnp.float32).at[dst].add(m)
    deg = jnp.zeros((N,), jnp.float32).at[dst].add(1.0)
    h = jnp.where(deg[:, None] > 0,
                  h_sum / jnp.maximum(deg, 1.0)[:, None], 0.0)
    W_n = jnp.concatenate([params["w_n_self"], params["w_n_agg"]], axis=0)
    hn = jax.nn.relu(jnp.concatenate([nfeats, h], axis=-1) @ W_n + params["b_n"])
    return hn + nfeats, m + efeats


def _rel_err(a, b):
    return float(jnp.max(jnp.abs(a - b)) / (jnp.max(jnp.abs(b)) + 1e-6))


# --------------------------------------------------------------------- main
if __name__ == "__main__":
    hidden_dim = 128      # lane-dense feature dimension
    N, E = 16, 32         # nodes, directed edges

    key = jax.random.PRNGKey(0)
    kp, kn, ke, ks, kd, kw = jax.random.split(key, 6)
    params = init_params(kp, hidden_dim)
    nfeats = jax.random.normal(kn, (N, hidden_dim), jnp.float32)
    efeats = jax.random.normal(ke, (E, hidden_dim), jnp.float32)
    src = jax.random.randint(ks, (E,), 0, N)
    dst = jax.random.randint(kd, (E,), 0, N)
    eweight = jax.random.uniform(kw, (E,), jnp.float32, 0.5, 1.5)

    # --- default path (eweight=None)
    node_out, edge_out = gcn_layer_edgecat(params, nfeats, efeats, src, dst)
    node_out = jax.block_until_ready(node_out)
    edge_out = jax.block_until_ready(edge_out)
    node_ref, edge_ref = reference_forward(params, nfeats, efeats, src, dst)

    assert node_out.shape == (N, hidden_dim)
    assert edge_out.shape == (E, hidden_dim)
    assert bool(jnp.all(jnp.isfinite(node_out)))
    assert bool(jnp.all(jnp.isfinite(edge_out)))
    # bf16 MXU inputs (f32 accumulation) -> compare vs f32 reference loosely
    nerr = _rel_err(node_out, node_ref)
    eerr = _rel_err(edge_out, edge_ref)
    assert nerr < 3e-2 and eerr < 3e-2, (nerr, eerr)

    # --- eweight path
    node_out_w, edge_out_w = gcn_layer_edgecat(params, nfeats, efeats, src, dst,
                                               eweight)
    node_out_w = jax.block_until_ready(node_out_w)
    edge_out_w = jax.block_until_ready(edge_out_w)
    node_ref_w, edge_ref_w = reference_forward(params, nfeats, efeats, src, dst,
                                               eweight)
    nerr_w = _rel_err(node_out_w, node_ref_w)
    eerr_w = _rel_err(edge_out_w, edge_ref_w)
    assert nerr_w < 3e-2 and eerr_w < 3e-2, (nerr_w, eerr_w)

    print("KERNEL_OK")
</pallas_src>

<mosaic_0001>
module attributes {stable_mosaic.version = 11 : i64} {
  func.func @_gcn_edgecat_kernel(%arg0: memref<16x128xf32, #tpu.memory_space<vmem>>, %arg1: memref<32x128xf32, #tpu.memory_space<vmem>>, %arg2: memref<32x1xf32, #tpu.memory_space<vmem>>, %arg3: memref<32x1xi32, #tpu.memory_space<vmem>>, %arg4: memref<32x1xi32, #tpu.memory_space<vmem>>, %arg5: memref<1x32xi32, #tpu.memory_space<vmem>>, %arg6: memref<128x128xf32, #tpu.memory_space<vmem>>, %arg7: memref<128x128xf32, #tpu.memory_space<vmem>>, %arg8: memref<128x128xf32, #tpu.memory_space<vmem>>, %arg9: memref<1x128xf32, #tpu.memory_space<vmem>>, %arg10: memref<128x128xf32, #tpu.memory_space<vmem>>, %arg11: memref<128x128xf32, #tpu.memory_space<vmem>>, %arg12: memref<1x128xf32, #tpu.memory_space<vmem>>, %arg13: memref<16x128xf32, #tpu.memory_space<vmem>>, %arg14: memref<32x128xf32, #tpu.memory_space<vmem>>) attributes {dimension_semantics = [], scalar_prefetch = 0 : i64, scratch_operands = 0 : i64, tpu.core_type = #tpu.core_type<tc>} {
    %c0 = arith.constant 0 : index
    %c0_0 = arith.constant 0 : index
    %0 = vector.load %arg0[%c0, %c0_0] : memref<16x128xf32, #tpu.memory_space<vmem>>, vector<16x128xf32>
    %c0_1 = arith.constant 0 : index
    %c0_2 = arith.constant 0 : index
    %1 = vector.load %arg1[%c0_1, %c0_2] : memref<32x128xf32, #tpu.memory_space<vmem>>, vector<32x128xf32>
    %2 = arith.truncf %0 : vector<16x128xf32> to vector<16x128xbf16>
    %c0_3 = arith.constant 0 : index
    %c0_4 = arith.constant 0 : index
    %3 = vector.load %arg3[%c0_3, %c0_4] : memref<32x1xi32, #tpu.memory_space<vmem>>, vector<32x1xi32>
    %c0_5 = arith.constant 0 : index
    %c0_6 = arith.constant 0 : index
    %4 = vector.load %arg4[%c0_5, %c0_6] : memref<32x1xi32, #tpu.memory_space<vmem>>, vector<32x1xi32>
    %c0_7 = arith.constant 0 : index
    %c0_8 = arith.constant 0 : index
    %5 = vector.load %arg5[%c0_7, %c0_8] : memref<1x32xi32, #tpu.memory_space<vmem>>, vector<1x32xi32>
    %6 = tpu.iota {dimensions = array<i32: 1>} : vector<32x32xi32>
    %7 = vector.broadcast %3 : vector<32x1xi32> to vector<32x32xi32>
    %8 = arith.cmpi eq, %6, %7 : vector<32x32xi32>
    %c16_i32 = arith.constant 16 : i32
    %9 = vector.broadcast %c16_i32 : i32 to vector<32x1xi32>
    %10 = arith.addi %4, %9 : vector<32x1xi32>
    %11 = vector.broadcast %10 : vector<32x1xi32> to vector<32x32xi32>
    %12 = arith.cmpi eq, %6, %11 : vector<32x32xi32>
    %13 = arith.ori %8, %12 : vector<32x32xi1>
    %14 = arith.extui %13 : vector<32x32xi1> to vector<32x32xi32>
    %15 = arith.sitofp %14 : vector<32x32xi32> to vector<32x32xf32>
    %16 = arith.truncf %15 : vector<32x32xf32> to vector<32x32xbf16>
    %17 = tpu.iota {dimensions = array<i32: 0>} : vector<16x32xi32>
    %18 = vector.broadcast %5 : vector<1x32xi32> to vector<16x32xi32>
    %19 = arith.cmpi eq, %17, %18 : vector<16x32xi32>
    %c0_9 = arith.constant 0 : index
    %c0_10 = arith.constant 0 : index
    %20 = vector.load %arg6[%c0_9, %c0_10] : memref<128x128xf32, #tpu.memory_space<vmem>>, vector<128x128xf32>
    %21 = arith.truncf %20 : vector<128x128xf32> to vector<128x128xbf16>
    %cst = arith.constant dense<0.000000e+00> : vector<16x128xf32>
    %22 = tpu.matmul %2, %21, %cst {dimension_numbers = #tpu.dot_dimension_numbers<[1], [0], [0], [1], [0, 0, 1, 1], [], []>} : vector<16x128xbf16>, vector<128x128xbf16>, vector<16x128xf32> -> vector<16x128xf32>
    %c0_11 = arith.constant 0 : index
    %c0_12 = arith.constant 0 : index
    %23 = vector.load %arg8[%c0_11, %c0_12] : memref<128x128xf32, #tpu.memory_space<vmem>>, vector<128x128xf32>
    %24 = arith.truncf %23 : vector<128x128xf32> to vector<128x128xbf16>
    %cst_13 = arith.constant dense<0.000000e+00> : vector<16x128xf32>
    %25 = tpu.matmul %2, %24, %cst_13 {dimension_numbers = #tpu.dot_dimension_numbers<[1], [0], [0], [1], [0, 0, 1, 1], [], []>} : vector<16x128xbf16>, vector<128x128xbf16>, vector<16x128xf32> -> vector<16x128xf32>
    %26 = tpu.concatenate %22, %25 in 0 : vector<16x128xf32>, vector<16x128xf32> -> vector<32x128xf32>
    %27 = arith.truncf %26 : vector<32x128xf32> to vector<32x128xbf16>
    %cst_14 = arith.constant dense<0.000000e+00> : vector<32x128xf32>
    %28 = tpu.matmul %16, %27, %cst_14 {dimension_numbers = #tpu.dot_dimension_numbers<[1], [0], [0], [1], [0, 0, 1, 1], [], []>} : vector<32x32xbf16>, vector<32x128xbf16>, vector<32x128xf32> -> vector<32x128xf32>
    %29 = arith.truncf %1 : vector<32x128xf32> to vector<32x128xbf16>
    %c0_15 = arith.constant 0 : index
    %c0_16 = arith.constant 0 : index
    %30 = vector.load %arg7[%c0_15, %c0_16] : memref<128x128xf32, #tpu.memory_space<vmem>>, vector<128x128xf32>
    %31 = arith.truncf %30 : vector<128x128xf32> to vector<128x128xbf16>
    %cst_17 = arith.constant dense<0.000000e+00> : vector<32x128xf32>
    %32 = tpu.matmul %29, %31, %cst_17 {dimension_numbers = #tpu.dot_dimension_numbers<[1], [0], [0], [1], [0, 0, 1, 1], [], []>} : vector<32x128xbf16>, vector<128x128xbf16>, vector<32x128xf32> -> vector<32x128xf32>
    %33 = arith.addf %28, %32 : vector<32x128xf32>
    %c0_18 = arith.constant 0 : index
    %c0_19 = arith.constant 0 : index
    %34 = vector.load %arg2[%c0_18, %c0_19] : memref<32x1xf32, #tpu.memory_space<vmem>>, vector<32x1xf32>
    %35 = vector.broadcast %34 : vector<32x1xf32> to vector<32x128xf32>
    %36 = arith.mulf %35, %33 : vector<32x128xf32>
    %c0_20 = arith.constant 0 : index
    %c0_21 = arith.constant 0 : index
    %37 = vector.load %arg9[%c0_20, %c0_21] : memref<1x128xf32, #tpu.memory_space<vmem>>, vector<1x128xf32>
    %38 = vector.broadcast %37 : vector<1x128xf32> to vector<32x128xf32>
    %39 = arith.addf %36, %38 : vector<32x128xf32>
    %cst_22 = arith.constant 0.000000e+00 : f32
    %40 = vector.broadcast %cst_22 : f32 to vector<32x128xf32>
    %41 = arith.maximumf %39, %40 : vector<32x128xf32>
    %42 = arith.extui %19 : vector<16x32xi1> to vector<16x32xi32>
    %43 = arith.sitofp %42 : vector<16x32xi32> to vector<16x32xf32>
    %44 = arith.truncf %43 : vector<16x32xf32> to vector<16x32xbf16>
    %45 = arith.truncf %41 : vector<32x128xf32> to vector<32x128xbf16>
    %cst_23 = arith.constant dense<0.000000e+00> : vector<16x128xf32>
    %46 = tpu.matmul %44, %45, %cst_23 {dimension_numbers = #tpu.dot_dimension_numbers<[1], [0], [0], [1], [0, 0, 1, 1], [], []>} : vector<16x32xbf16>, vector<32x128xbf16>, vector<16x128xf32> -> vector<16x128xf32>
    %47 = arith.extui %19 : vector<16x32xi1> to vector<16x32xi32>
    %48 = arith.sitofp %47 : vector<16x32xi32> to vector<16x32xf32>
    %cst_24 = arith.constant dense<0.000000e+00> : vector<16xf32>
    %49 = vector.multi_reduction <add>, %48, %cst_24 [1] : vector<16x32xf32> to vector<16xf32>
    %50 = vector.shape_cast %49 : vector<16xf32> to vector<16x1xf32>
    %cst_25 = arith.constant 0.000000e+00 : f32
    %51 = vector.broadcast %cst_25 : f32 to vector<16x1xf32>
    %52 = arith.cmpf ogt, %50, %51 : vector<16x1xf32>
    %cst_26 = arith.constant 1.000000e+00 : f32
    %53 = vector.broadcast %cst_26 : f32 to vector<16x1xf32>
    %54 = arith.maximumf %50, %53 : vector<16x1xf32>
    %55 = tpu.reciprocal %54 {approx = true} : vector<16x1xf32> -> vector<16x1xf32>
    %cst_27 = arith.constant 0.000000e+00 : f32
    %56 = vector.broadcast %cst_27 : f32 to vector<16x1xf32>
    %57 = arith.select %52, %55, %56 : vector<16x1xi1>, vector<16x1xf32>
    %58 = vector.broadcast %57 : vector<16x1xf32> to vector<16x128xf32>
    %59 = arith.mulf %46, %58 : vector<16x128xf32>
    %c0_28 = arith.constant 0 : index
    %c0_29 = arith.constant 0 : index
    %60 = vector.load %arg10[%c0_28, %c0_29] : memref<128x128xf32, #tpu.memory_space<vmem>>, vector<128x128xf32>
    %61 = arith.truncf %60 : vector<128x128xf32> to vector<128x128xbf16>
    %cst_30 = arith.constant dense<0.000000e+00> : vector<16x128xf32>
    %62 = tpu.matmul %2, %61, %cst_30 {dimension_numbers = #tpu.dot_dimension_numbers<[1], [0], [0], [1], [0, 0, 1, 1], [], []>} : vector<16x128xbf16>, vector<128x128xbf16>, vector<16x128xf32> -> vector<16x128xf32>
    %63 = arith.truncf %59 : vector<16x128xf32> to vector<16x128xbf16>
    %c0_31 = arith.constant 0 : index
    %c0_32 = arith.constant 0 : index
    %64 = vector.load %arg11[%c0_31, %c0_32] : memref<128x128xf32, #tpu.memory_space<vmem>>, vector<128x128xf32>
    %65 = arith.truncf %64 : vector<128x128xf32> to vector<128x128xbf16>
    %cst_33 = arith.constant dense<0.000000e+00> : vector<16x128xf32>
    %66 = tpu.matmul %63, %65, %cst_33 {dimension_numbers = #tpu.dot_dimension_numbers<[1], [0], [0], [1], [0, 0, 1, 1], [], []>} : vector<16x128xbf16>, vector<128x128xbf16>, vector<16x128xf32> -> vector<16x128xf32>
    %67 = arith.addf %62, %66 : vector<16x128xf32>
    %c0_34 = arith.constant 0 : index
    %c0_35 = arith.constant 0 : index
    %68 = vector.load %arg12[%c0_34, %c0_35] : memref<1x128xf32, #tpu.memory_space<vmem>>, vector<1x128xf32>
    %69 = vector.broadcast %68 : vector<1x128xf32> to vector<16x128xf32>
    %70 = arith.addf %67, %69 : vector<16x128xf32>
    %cst_36 = arith.constant 0.000000e+00 : f32
    %71 = vector.broadcast %cst_36 : f32 to vector<16x128xf32>
    %72 = arith.maximumf %70, %71 : vector<16x128xf32>
    %73 = arith.addf %72, %0 : vector<16x128xf32>
    %c0_37 = arith.constant 0 : index
    %c0_38 = arith.constant 0 : index
    %74 = vector.load %arg13[%c0_37, %c0_38] : memref<16x128xf32, #tpu.memory_space<vmem>>, vector<16x128xf32>
    tpu.vector_store %arg13[%c0_37, %c0_38], %73 {strides = array<i32>} : memref<16x128xf32, #tpu.memory_space<vmem>>, vector<16x128xf32>,
    %75 = arith.addf %41, %1 : vector<32x128xf32>
    %c0_39 = arith.constant 0 : index
    %c0_40 = arith.constant 0 : index
    %76 = vector.load %arg14[%c0_39, %c0_40] : memref<32x128xf32, #tpu.memory_space<vmem>>, vector<32x128xf32>
    tpu.vector_store %arg14[%c0_39, %c0_40], %75 {strides = array<i32>} : memref<32x128xf32, #tpu.memory_space<vmem>>, vector<32x128xf32>,
    return
  }
}

</mosaic_0001>

<llo_original>
// kernel: tpu_custom_call.1
$region0: #{tpu_custom_call.1}
  #allocation0 [shape = 'u32[]', space=smem, size = 0x4, offset = 0x4, fixed_abs, tag = 'smem constant byte address 0x4 - core index']
  #allocation1 [shape = 'u32[144,128]{1,0:T(1,128)}', space=vmem, size = 0x12000, scoped, tag = 'internal scratch']
  %s0 = inlined_call_operand.vmem [shape: f32[16,128], index: 0, kind: input, shape index: {}]
  %s1 = inlined_call_operand.vmem [shape: f32[32,128], index: 1, kind: input, shape index: {}]
  %s2 = inlined_call_operand.vmem [shape: f32[32,1], index: 2, kind: input, shape index: {}]
  %s3 = inlined_call_operand.vmem [shape: s32[32,1], index: 3, kind: input, shape index: {}]
  %s4 = inlined_call_operand.vmem [shape: s32[32,1], index: 4, kind: input, shape index: {}]
  %s5 = inlined_call_operand.vmem [shape: s32[1,32], index: 5, kind: input, shape index: {}]
  %s6 = inlined_call_operand.hbm [shape: f32[128,128], index: 6, kind: input, shape index: {}]
  %s7 = inlined_call_operand.hbm [shape: f32[128,128], index: 7, kind: input, shape index: {}]
  %s8 = inlined_call_operand.hbm [shape: f32[128,128], index: 8, kind: input, shape index: {}]
  %s9 = inlined_call_operand.vmem [shape: f32[1,128], index: 9, kind: input, shape index: {}]
  %s10 = inlined_call_operand.hbm [shape: f32[128,128], index: 10, kind: input, shape index: {}]
  %s11 = inlined_call_operand.hbm [shape: f32[128,128], index: 11, kind: input, shape index: {}]
  %s12 = inlined_call_operand.vmem [shape: f32[1,128], index: 12, kind: input, shape index: {}]
  %s13 = inlined_call_operand.hbm [shape: f32[16,128], index: 13, kind: output, shape index: {0}]
  %s14 = inlined_call_operand.hbm [shape: f32[32,128], index: 14, kind: output, shape index: {1}]
  %15 = xla_tuple %s13, %s14
  %s16 = sld [smem:[#allocation0]]
  $region90: #{tpu_custom_call.1} parent=0
    _
  %s18 = ssub.s32 1, %s16
  %s19 = scalar_select 0, %s18, %s16
  $region1: #{tpu_custom_call.1} parent=0
    #allocation2 [shape = 'u8[65536]{0}', space=vmem, size = 0x10000, scoped, tag = 'input window, operand 6, single buffered']
    #allocation3 [shape = 's32[1]{0}', space=sflag, size = 0x4, scoped, tag = 'scoped memory for tpu_custom_call.1']
    #allocation4 [shape = 's32[1]{0}', space=sflag, size = 0x4, scoped, tag = 'scoped memory for tpu_custom_call.1']
    #allocation5 [shape = 'u8[65536]{0}', space=vmem, size = 0x10000, scoped, tag = 'input window, operand 7, single buffered']
    #allocation6 [shape = 's32[1]{0}', space=sflag, size = 0x4, scoped, tag = 'scoped memory for tpu_custom_call.1']
    #allocation7 [shape = 'u8[65536]{0}', space=vmem, size = 0x10000, scoped, tag = 'input window, operand 8, single buffered']
    #allocation8 [shape = 'u8[65536]{0}', space=vmem, size = 0x10000, scoped, tag = 'input window, operand 10, single buffered']
    #allocation9 [shape = 's32[1]{0}', space=sflag, size = 0x4, scoped, tag = 'scoped memory for tpu_custom_call.1']
    #allocation10 [shape = 'u8[65536]{0}', space=vmem, size = 0x10000, scoped, tag = 'input window, operand 11, single buffered']
    #allocation11 [shape = 'u8[8192]{0}', space=vmem, size = 0x2000, scoped, tag = 'output window, operand 0, single buffered']
    #allocation12 [shape = 'u8[16384]{0}', space=vmem, size = 0x4000, scoped, tag = 'output window, operand 1, single buffered']
    #allocation13 [shape = 's32[1]{0}', space=sflag, size = 0x4, scoped, tag = 'scoped memory for tpu_custom_call.1']
    %20 = vsyncpa [#allocation3], 0
    %21 = vsyncpa [#allocation6], 0
    %22 = vsyncpa [#allocation9], 0
    %23 = vsyncpa [#allocation4], 0
    %24 = vsyncpa [#allocation13], 0
    // Predicated region
    $region2: #{tpu_custom_call.1} parent=1 // pred_check
      _
    $region3: #{tpu_custom_call.1} parent=1 // pred_check_branch
      %26 = sbr.rel (0) target = $region5
    $region4: #{tpu_custom_call.1} parent=1 // pred_region
      _
    $region5: #{tpu_custom_call.1} parent=1 // pred_fallthru
      _
    // Predicated region
    $region6: #{tpu_custom_call.1} parent=1 // pred_check
      _
    $region7: #{tpu_custom_call.1} parent=1 // pred_check_branch
      %28 = sbr.rel (0) target = $region9
    $region8: #{tpu_custom_call.1} parent=1 // pred_region
      _
    $region9: #{tpu_custom_call.1} parent=1 // pred_fallthru
      _
    // Predicated region
    $region10: #{tpu_custom_call.1} parent=1 // pred_check
      _
    $region11: #{tpu_custom_call.1} parent=1 // pred_check_branch
      %30 = sbr.rel (0) target = $region13
    $region12: #{tpu_custom_call.1} parent=1 // pred_region
      _
    $region13: #{tpu_custom_call.1} parent=1 // pred_fallthru
      _
    // Predicated region
    $region14: #{tpu_custom_call.1} parent=1 // pred_check
      _
    $region15: #{tpu_custom_call.1} parent=1 // pred_check_branch
      %32 = sbr.rel (0) target = $region17
    $region16: #{tpu_custom_call.1} parent=1 // pred_region
      _
    $region17: #{tpu_custom_call.1} parent=1 // pred_fallthru
      _
    // Predicated region
    $region18: #{tpu_custom_call.1} parent=1 // pred_check
      _
    $region19: #{tpu_custom_call.1} parent=1 // pred_check_branch
      %34 = sbr.rel (0) target = $region21
    $region20: #{tpu_custom_call.1} parent=1 // pred_region
      _
    $region21: #{tpu_custom_call.1} parent=1 // pred_fallthru
      _
    // Predicated region
    $region22: #{tpu_custom_call.1} parent=1 // pred_check
      _
    $region23: #{tpu_custom_call.1} parent=1 // pred_check_branch
      %36 = sbr.rel (0) target = $region25
    $region24: #{tpu_custom_call.1} parent=1 // pred_region
      _
    $region25: #{tpu_custom_call.1} parent=1 // pred_fallthru
      _
    // Predicated region
    $region26: #{tpu_custom_call.1} parent=1 // pred_check
      _
    $region27: #{tpu_custom_call.1} parent=1 // pred_check_branch
      %38 = sbr.rel (0) target = $region29
    $region28: #{tpu_custom_call.1} parent=1 // pred_region
      %s40 = ssub.s32 2048, 2048
      %41 = vsyncadd [#allocation3], %s40
      %s42 = sshll.u32 [#allocation2], 4
      %s43 = int_to_ptr.vmem [resolvable:$true] %s42
      %48 = dma.hbm_to_vmem [thread:$0]  %s6, 2048, %s43, [#allocation3], 128, 128, 8
    $region29: #{tpu_custom_call.1} parent=1 // pred_fallthru
      _
    // Predicated region
    $region30: #{tpu_custom_call.1} parent=1 // pred_check
      _
    $region31: #{tpu_custom_call.1} parent=1 // pred_check_branch
      %50 = sbr.rel (0) target = $region33
    $region32: #{tpu_custom_call.1} parent=1 // pred_region
      %s52 = ssub.s32 2048, 2048
      %53 = vsyncadd [#allocation6], %s52
      %s54 = sshll.u32 [#allocation5], 4
      %s55 = int_to_ptr.vmem [resolvable:$true] %s54
      %60 = dma.hbm_to_vmem [thread:$0]  %s7, 2048, %s55, [#allocation6], 128, 128, 8
    $region33: #{tpu_custom_call.1} parent=1 // pred_fallthru
      _
    // Predicated region
    $region34: #{tpu_custom_call.1} parent=1 // pred_check
      _
    $region35: #{tpu_custom_call.1} parent=1 // pred_check_branch
      %62 = sbr.rel (0) target = $region37
    $region36: #{tpu_custom_call.1} parent=1 // pred_region
      %s64 = ssub.s32 2048, 2048
      %65 = vsyncadd [#allocation6], %s64
      %s66 = sshll.u32 [#allocation7], 4
      %s67 = int_to_ptr.vmem [resolvable:$true] %s66
      %72 = dma.hbm_to_vmem [thread:$0]  %s8, 2048, %s67, [#allocation6], 128, 128, 8
    $region37: #{tpu_custom_call.1} parent=1 // pred_fallthru
      _
    // Predicated region
    $region38: #{tpu_custom_call.1} parent=1 // pred_check
      _
    $region39: #{tpu_custom_call.1} parent=1 // pred_check_branch
      %74 = sbr.rel (0) target = $region41
    $region40: #{tpu_custom_call.1} parent=1 // pred_region
      _
    $region41: #{tpu_custom_call.1} parent=1 // pred_fallthru
      _
    // Predicated region
    $region42: #{tpu_custom_call.1} parent=1 // pred_check
      _
    $region43: #{tpu_custom_call.1} parent=1 // pred_check_branch
      %76 = sbr.rel (0) target = $region45
    $region44: #{tpu_custom_call.1} parent=1 // pred_region
      %s78 = ssub.s32 2048, 2048
      %79 = vsyncadd [#allocation9], %s78
      %s80 = sshll.u32 [#allocation8], 4
      %s81 = int_to_ptr.vmem [resolvable:$true] %s80
      %86 = dma.hbm_to_vmem [thread:$0]  %s10, 2048, %s81, [#allocation9], 128, 128, 8
    $region45: #{tpu_custom_call.1} parent=1 // pred_fallthru
      _
    // Predicated region
    $region46: #{tpu_custom_call.1} parent=1 // pred_check
      _
    $region47: #{tpu_custom_call.1} parent=1 // pred_check_branch
      %88 = sbr.rel (0) target = $region49
    $region48: #{tpu_custom_call.1} parent=1 // pred_region
      %s90 = ssub.s32 2048, 2048
      %91 = vsyncadd [#allocation9], %s90
      %s92 = sshll.u32 [#allocation10], 4
      %s93 = int_to_ptr.vmem [resolvable:$true] %s92
      %98 = dma.hbm_to_vmem [thread:$0]  %s11, 2048, %s93, [#allocation9], 128, 128, 8
    $region49: #{tpu_custom_call.1} parent=1 // pred_fallthru
      _
    // Predicated region
    $region50: #{tpu_custom_call.1} parent=1 // pred_check
      _
    $region51: #{tpu_custom_call.1} parent=1 // pred_check_branch
      %100 = sbr.rel (0) target = $region53
    $region52: #{tpu_custom_call.1} parent=1 // pred_region
      _
    $region53: #{tpu_custom_call.1} parent=1 // pred_fallthru
      _
    // Predicated region
    $region54: #{tpu_custom_call.1} parent=1 // pred_check
      _
    $region55: #{tpu_custom_call.1} parent=1 // pred_check_branch
      %102 = sbr.rel (0) target = $region57
    $region56: #{tpu_custom_call.1} parent=1 // pred_region
      %103 = dma.done [#allocation3], 2048
    $region57: #{tpu_custom_call.1} parent=1 // pred_fallthru
      _
    // Predicated region
    $region58: #{tpu_custom_call.1} parent=1 // pred_check
      _
    $region59: #{tpu_custom_call.1} parent=1 // pred_check_branch
      %105 = sbr.rel (0) target = $region61
    $region60: #{tpu_custom_call.1} parent=1 // pred_region
      %106 = dma.done [#allocation6], 2048
    $region61: #{tpu_custom_call.1} parent=1 // pred_fallthru
      _
    // Predicated region
    $region62: #{tpu_custom_call.1} parent=1 // pred_check
      _
    $region63: #{tpu_custom_call.1} parent=1 // pred_check_branch
      %108 = sbr.rel (0) target = $region65
    $region64: #{tpu_custom_call.1} parent=1 // pred_region
      %109 = dma.done [#allocation6], 2048
    $region65: #{tpu_custom_call.1} parent=1 // pred_fallthru
      _
    // Predicated region
    $region66: #{tpu_custom_call.1} parent=1 // pred_check
      _
    $region67: #{tpu_custom_call.1} parent=1 // pred_check_branch
      %111 = sbr.rel (0) target = $region69
    $region68: #{tpu_custom_call.1} parent=1 // pred_region
      %112 = dma.done [#allocation9], 2048
    $region69: #{tpu_custom_call.1} parent=1 // pred_fallthru
      _
    // Predicated region
    $region70: #{tpu_custom_call.1} parent=1 // pred_check
      _
    $region71: #{tpu_custom_call.1} parent=1 // pred_check_branch
      %114 = sbr.rel (0) target = $region73
    $region72: #{tpu_custom_call.1} parent=1 // pred_region
      %115 = dma.done [#allocation9], 2048
    $region73: #{tpu_custom_call.1} parent=1 // pred_fallthru
      _
    %v117 = vld [vmem:[%s0] sm:$0xff]
    %v118 = vld [vmem:[%s0 + $0x8] sm:$0xff]
    %v119 = vld [vmem:[%s1] sm:$0xff]
    %v120 = vld [vmem:[%s1 + $0x8] sm:$0xff]
    %v121 = vld [vmem:[%s1 + $0x10] sm:$0xff]
    %v122 = vld [vmem:[%s1 + $0x18] sm:$0xff]
    %v123 = vpack.c.bf16 %v118, %v117
    %v124 = vld [vmem:[%s3] sm:$0xff]
    %v125 = vld [vmem:[%s3 + $0x8] sm:$0xff]
    %v126 = vld [vmem:[%s3 + $0x10] sm:$0xff]
    %v127 = vld [vmem:[%s3 + $0x18] sm:$0xff]
    %v128 = vld [vmem:[%s4] sm:$0xff]
    %v129 = vld [vmem:[%s4 + $0x8] sm:$0xff]
    %v130 = vld [vmem:[%s4 + $0x10] sm:$0xff]
    %v131 = vld [vmem:[%s4 + $0x18] sm:$0xff]
    %v132 = vld [vmem:[%s5] sm:$0x1]
    %v133 = vlaneseq
    %v134 = vand.u32 %v133, 127
    %135 = vset.pattern.permute.xlu0 0
    %136 = vperm.xlu0 %135, %v124
    %v137 = vpop.permute.xlu0 %136
    %138 = vset.pattern.permute.xlu0 0
    %139 = vperm.xlu0 %138, %v125
    %v140 = vpop.permute.xlu0 %139
    %141 = vset.pattern.permute.xlu0 0
    %142 = vperm.xlu0 %141, %v126
    %v143 = vpop.permute.xlu0 %142
    %144 = vset.pattern.permute.xlu0 0
    %145 = vperm.xlu0 %144, %v127
    %v146 = vpop.permute.xlu0 %145
    %vm147 = vcmp.eq.s32.totalorder %v134, %v137
    %vm148 = vcmp.eq.s32.totalorder %v134, %v140
    %vm149 = vcmp.eq.s32.totalorder %v134, %v143
    %vm150 = vcmp.eq.s32.totalorder %v134, %v146
    %v151 = vadd.s32 %v128, 16
    %v152 = vadd.s32 %v129, 16
    %v153 = vadd.s32 %v130, 16
    %v154 = vadd.s32 %v131, 16
    %155 = vset.pattern.permute.xlu0 0
    %156 = vperm.xlu0 %155, %v151
    %v157 = vpop.permute.xlu0 %156
    %158 = vset.pattern.permute.xlu0 0
    %159 = vperm.xlu0 %158, %v152
    %v160 = vpop.permute.xlu0 %159
    %161 = vset.pattern.permute.xlu0 0
    %162 = vperm.xlu0 %161, %v153
    %v163 = vpop.permute.xlu0 %162
    %164 = vset.pattern.permute.xlu0 0
    %165 = vperm.xlu0 %164, %v154
    %v166 = vpop.permute.xlu0 %165
    %vm167 = vcmp.eq.s32.totalorder %v134, %v157
    %vm168 = vcmp.eq.s32.totalorder %v134, %v160
    %vm169 = vcmp.eq.s32.totalorder %v134, %v163
    %vm170 = vcmp.eq.s32.totalorder %v134, %v166
    %vm171 = vmor %vm147, %vm167
    %vm172 = vmor %vm148, %vm168
    %vm173 = vmor %vm149, %vm169
    %vm174 = vmor %vm150, %vm170
    %v175 = vsel %vm171, 1, 0
    %v176 = vsel %vm172, 1, 0
    %v177 = vsel %vm173, 1, 0
    %v178 = vsel %vm174, 1, 0
    %v179 = vcvt.s32.f32 %v175
    %v180 = vcvt.s32.f32 %v176
    %v181 = vcvt.s32.f32 %v177
    %v182 = vcvt.s32.f32 %v178
    %v183 = vpack.c.bf16 %v180, %v179
    %v184 = vpack.c.bf16 %v182, %v181
    %v185 = vlaneseq
    %v186 = vshrl.u32 %v185, 7
    %v187 = vadd.s32 %v186, 8
    %v188 = vlaneseq
    %v189 = vshrl.u32 %v188, 7
    %v190 = vsub.s32 0, %v189
    %v191 = vrot.slane %v132, %v190
    %vm192 = vcmp.eq.s32.totalorder %v186, %v191
    %vm193 = vcmp.eq.s32.totalorder %v187, %v191
    %v194 = vld [vmem:[#allocation2] sm:$0xff]
    %v195 = vld [vmem:[#allocation2 + $0x8] sm:$0xff]
    %v196 = vld [vmem:[#allocation2 + $0x10] sm:$0xff]
    %v197 = vld [vmem:[#allocation2 + $0x18] sm:$0xff]
    %v198 = vld [vmem:[#allocation2 + $0x20] sm:$0xff]
    %v199 = vld [vmem:[#allocation2 + $0x28] sm:$0xff]
    %v200 = vld [vmem:[#allocation2 + $0x30] sm:$0xff]
    %v201 = vld [vmem:[#allocation2 + $0x38] sm:$0xff]
    %v202 = vld [vmem:[#allocation2 + $0x40] sm:$0xff]
    %v203 = vld [vmem:[#allocation2 + $0x48] sm:$0xff]
    %v204 = vld [vmem:[#allocation2 + $0x50] sm:$0xff]
    %v205 = vld [vmem:[#allocation2 + $0x58] sm:$0xff]
    %v206 = vld [vmem:[#allocation2 + $0x60] sm:$0xff]
    %v207 = vld [vmem:[#allocation2 + $0x68] sm:$0xff]
    %v208 = vld [vmem:[#allocation2 + $0x70] sm:$0xff]
    %v209 = vld [vmem:[#allocation2 + $0x78] sm:$0xff]
    %v210 = vpack.c.bf16 %v195, %v194
    %v211 = vpack.c.bf16 %v197, %v196
    %v212 = vpack.c.bf16 %v199, %v198
    %v213 = vpack.c.bf16 %v201, %v200
    %v214 = vpack.c.bf16 %v203, %v202
    %v215 = vpack.c.bf16 %v205, %v204
    %v216 = vpack.c.bf16 %v207, %v206
    %v217 = vpack.c.bf16 %v209, %v208
    %218 = vmatprep.subr.bf16.mxu0 0
    %219 = vmatpush1.bf16.msra.mxu0 %v217
    %220 = vmatprep.subr.bf16.mxu0 0
    %221 = vmatpush1.bf16.msra.mxu0 %v216
    %222 = vmatprep.subr.bf16.mxu0 0
    %223 = vmatpush1.bf16.msra.mxu0 %v215
    %224 = vmatprep.subr.bf16.mxu0 0
    %225 = vmatpush1.bf16.msra.mxu0 %v214
    %226 = vmatprep.subr.bf16.mxu0 0
    %227 = vmatpush1.bf16.msra.mxu0 %v213
    %228 = vmatprep.subr.bf16.mxu0 0
    %229 = vmatpush1.bf16.msra.mxu0 %v212
    %230 = vmatprep.subr.bf16.mxu0 0
    %231 = vmatpush1.bf16.msra.mxu0 %v211
    %232 = vmatprep.subr.bf16.mxu0 0
    %233 = vmatpush1.bf16.msra.mxu0 %v210
    %234 = vmatprep.subr.bf16.mxu0 0
    %235 = vmatpush2.bf16.msra.mxu0 0
    %236 = vmatprep.subr.bf16.mxu0 0
    %237 = vmatpush2.bf16.msra.mxu0 0
    %238 = vmatprep.subr.bf16.mxu0 0
    %239 = vmatpush2.bf16.msra.mxu0 0
    %240 = vmatprep.subr.bf16.mxu0 0
    %241 = vmatpush2.bf16.msra.mxu0 0
    %242 = vmatprep.subr.bf16.mxu0 0
    %243 = vmatpush2.bf16.msra.mxu0 0
    %244 = vmatprep.subr.bf16.mxu0 0
    %245 = vmatpush2.bf16.msra.mxu0 0
    %246 = vmatprep.subr.bf16.mxu0 0
    %247 = vmatpush2.bf16.msra.mxu0 0
    %248 = vmatprep.subr.bf16.mxu0 0
    %249 = vmatpush2.bf16.msra.mxu0 0
    %250 = vmatprep.mubr.bf16.mxu0 0
    %251 = vmatmul.mubr.bf16.gmra.mxu0 %v123
    %v252 = vpop.f32.mrf.mxu0
    %v253 = vadd.f32 0.0, %v252
    %v254 = vpop.f32.mrf.mxu0
    %v255 = vpop.f32.mrf.mxu0
    %v256 = vadd.f32 0.0, %v255
    %v257 = vpop.f32.mrf.mxu0
    %258 = vdwg.mxu0
    %v259 = vld [vmem:[#allocation7] sm:$0xff]
    %v260 = vld [vmem:[#allocation7 + $0x8] sm:$0xff]
    %v261 = vld [vmem:[#allocation7 + $0x10] sm:$0xff]
    %v262 = vld [vmem:[#allocation7 + $0x18] sm:$0xff]
    %v263 = vld [vmem:[#allocation7 + $0x20] sm:$0xff]
    %v264 = vld [vmem:[#allocation7 + $0x28] sm:$0xff]
    %v265 = vld [vmem:[#allocation7 + $0x30] sm:$0xff]
    %v266 = vld [vmem:[#allocation7 + $0x38] sm:$0xff]
    %v267 = vld [vmem:[#allocation7 + $0x40] sm:$0xff]
    %v268 = vld [vmem:[#allocation7 + $0x48] sm:$0xff]
    %v269 = vld [vmem:[#allocation7 + $0x50] sm:$0xff]
    %v270 = vld [vmem:[#allocation7 + $0x58] sm:$0xff]
    %v271 = vld [vmem:[#allocation7 + $0x60] sm:$0xff]
    %v272 = vld [vmem:[#allocation7 + $0x68] sm:$0xff]
    %v273 = vld [vmem:[#allocation7 + $0x70] sm:$0xff]
    %v274 = vld [vmem:[#allocation7 + $0x78] sm:$0xff]
    %v275 = vpack.c.bf16 %v260, %v259
    %v276 = vpack.c.bf16 %v262, %v261
    %v277 = vpack.c.bf16 %v264, %v263
    %v278 = vpack.c.bf16 %v266, %v265
    %v279 = vpack.c.bf16 %v268, %v267
    %v280 = vpack.c.bf16 %v270, %v269
    %v281 = vpack.c.bf16 %v272, %v271
    %v282 = vpack.c.bf16 %v274, %v273
    %283 = vmatprep.subr.bf16.mxu0 0
    %284 = vmatpush1.bf16.msra.mxu0 %v282
    %285 = vmatprep.subr.bf16.mxu0 0
    %286 = vmatpush1.bf16.msra.mxu0 %v281
    %287 = vmatprep.subr.bf16.mxu0 0
    %288 = vmatpush1.bf16.msra.mxu0 %v280
    %289 = vmatprep.subr.bf16.mxu0 0
    %290 = vmatpush1.bf16.msra.mxu0 %v279
    %291 = vmatprep.subr.bf16.mxu0 0
    %292 = vmatpush1.bf16.msra.mxu0 %v278
    %293 = vmatprep.subr.bf16.mxu0 0
    %294 = vmatpush1.bf16.msra.mxu0 %v277
    %295 = vmatprep.subr.bf16.mxu0 0
    %296 = vmatpush1.bf16.msra.mxu0 %v276
    %297 = vmatprep.subr.bf16.mxu0 0
    %298 = vmatpush1.bf16.msra.mxu0 %v275
    %299 = vmatprep.subr.bf16.mxu0 0
    %300 = vmatpush2.bf16.msra.mxu0 0
    %301 = vmatprep.subr.bf16.mxu0 0
    %302 = vmatpush2.bf16.msra.mxu0 0
    %303 = vmatprep.subr.bf16.mxu0 0
    %304 = vmatpush2.bf16.msra.mxu0 0
    %305 = vmatprep.subr.bf16.mxu0 0
    %306 = vmatpush2.bf16.msra.mxu0 0
    %307 = vmatprep.subr.bf16.mxu0 0
    %308 = vmatpush2.bf16.msra.mxu0 0
    %309 = vmatprep.subr.bf16.mxu0 0
    %310 = vmatpush2.bf16.msra.mxu0 0
    %311 = vmatprep.subr.bf16.mxu0 0
    %312 = vmatpush2.bf16.msra.mxu0 0
    %313 = vmatprep.subr.bf16.mxu0 0
    %314 = vmatpush2.bf16.msra.mxu0 0
    %315 = vmatprep.mubr.bf16.mxu0 0
    %316 = vmatmul.mubr.bf16.gmra.mxu0 %v123
    %v317 = vpop.f32.mrf.mxu0
    %v318 = vadd.f32 0.0, %v317
    %v319 = vpop.f32.mrf.mxu0
    %v320 = vpop.f32.mrf.mxu0
    %v321 = vadd.f32 0.0, %v320
    %v322 = vpop.f32.mrf.mxu0
    %323 = vdwg.mxu0
    %v324 = vpack.c.bf16 %v256, %v253
    %v325 = vpack.c.bf16 %v321, %v318
    %v326 = vpack.c.bf16 %v120, %v119
    %v327 = vpack.c.bf16 %v122, %v121
    %v328 = vld [vmem:[#allocation5] sm:$0xff]
    %v329 = vld [vmem:[#allocation5 + $0x8] sm:$0xff]
    %v330 = vld [vmem:[#allocation5 + $0x10] sm:$0xff]
    %v331 = vld [vmem:[#allocation5 + $0x18] sm:$0xff]
    %v332 = vld [vmem:[#allocation5 + $0x20] sm:$0xff]
    %v333 = vld [vmem:[#allocation5 + $0x28] sm:$0xff]
    %v334 = vld [vmem:[#allocation5 + $0x30] sm:$0xff]
    %v335 = vld [vmem:[#allocation5 + $0x38] sm:$0xff]
    %v336 = vld [vmem:[#allocation5 + $0x40] sm:$0xff]
    %v337 = vld [vmem:[#allocation5 + $0x48] sm:$0xff]
    %v338 = vld [vmem:[#allocation5 + $0x50] sm:$0xff]
    %v339 = vld [vmem:[#allocation5 + $0x58] sm:$0xff]
    %v340 = vld [vmem:[#allocation5 + $0x60] sm:$0xff]
    %v341 = vld [vmem:[#allocation5 + $0x68] sm:$0xff]
    %v342 = vld [vmem:[#allocation5 + $0x70] sm:$0xff]
    %v343 = vld [vmem:[#allocation5 + $0x78] sm:$0xff]
    %v344 = vpack.c.bf16 %v329, %v328
    %v345 = vpack.c.bf16 %v331, %v330
    %v346 = vpack.c.bf16 %v333, %v332
    %v347 = vpack.c.bf16 %v335, %v334
    %v348 = vpack.c.bf16 %v337, %v336
    %v349 = vpack.c.bf16 %v339, %v338
    %v350 = vpack.c.bf16 %v341, %v340
    %v351 = vpack.c.bf16 %v343, %v342
    %352 = vmatprep.subr.bf16.mxu0 0
    %353 = vmatpush1.bf16.msra.mxu0 %v351
    %354 = vmatprep.subr.bf16.mxu0 0
    %355 = vmatpush1.bf16.msra.mxu0 %v350
    %356 = vmatprep.subr.bf16.mxu0 0
    %357 = vmatpush1.bf16.msra.mxu0 %v349
    %358 = vmatprep.subr.bf16.mxu0 0
    %359 = vmatpush1.bf16.msra.mxu0 %v348
    %360 = vmatprep.subr.bf16.mxu0 0
    %361 = vmatpush1.bf16.msra.mxu0 %v347
    %362 = vmatprep.subr.bf16.mxu0 0
    %363 = vmatpush1.bf16.msra.mxu0 %v346
    %364 = vmatprep.subr.bf16.mxu0 0
    %365 = vmatpush1.bf16.msra.mxu0 %v345
    %366 = vmatprep.subr.bf16.mxu0 0
    %367 = vmatpush1.bf16.msra.mxu0 %v344
    %368 = vmatprep.subr.bf16.mxu0 0
    %369 = vmatpush2.bf16.msra.mxu0 0
    %370 = vmatprep.subr.bf16.mxu0 0
    %371 = vmatpush2.bf16.msra.mxu0 0
    %372 = vmatprep.subr.bf16.mxu0 0
    %373 = vmatpush2.bf16.msra.mxu0 0
    %374 = vmatprep.subr.bf16.mxu0 0
    %375 = vmatpush2.bf16.msra.mxu0 0
    %376 = vmatprep.subr.bf16.mxu0 0
    %377 = vmatpush2.bf16.msra.mxu0 0
    %378 = vmatprep.subr.bf16.mxu0 0
    %379 = vmatpush2.bf16.msra.mxu0 0
    %380 = vmatprep.subr.bf16.mxu0 0
    %381 = vmatpush2.bf16.msra.mxu0 0
    %382 = vmatprep.subr.bf16.mxu0 0
    %383 = vmatpush2.bf16.msra.mxu0 0
    %384 = vmatprep.mubr.bf16.mxu0 0
    %385 = vmatmul.mubr.bf16.gmra.mxu0 %v326
    %v386 = vpop.f32.mrf.mxu0
    %v387 = vadd.f32 0.0, %v386
    %v388 = vpop.f32.mrf.mxu0
    %v389 = vpop.f32.mrf.mxu0
    %v390 = vadd.f32 0.0, %v389
    %v391 = vpop.f32.mrf.mxu0
    %392 = vmatprep.mubr.bf16.mxu0 0
    %393 = vmatmul.mubr.bf16.gmra.mxu0 %v327
    %v394 = vpop.f32.mrf.mxu0
    %v395 = vadd.f32 0.0, %v394
    %v396 = vpop.f32.mrf.mxu0
    %v397 = vpop.f32.mrf.mxu0
    %v398 = vadd.f32 0.0, %v397
    %v399 = vpop.f32.mrf.mxu0
    %400 = vdwg.mxu0
    %vm401 = vcmask 261120
    %v403 = vsel %vm401, %v183, 0
    %v406 = vsel %vm401, %v184, 0
    %408 = vmatprep.subr.bf16.mxu0 0
    %409 = vmatpush1.bf16.msra.mxu0 0
    %410 = vmatprep.subr.bf16.mxu0 0
    %411 = vmatpush1.bf16.msra.mxu0 0
    %412 = vmatprep.subr.bf16.mxu0 0
    %413 = vmatpush1.bf16.msra.mxu0 0
    %414 = vmatprep.subr.bf16.mxu0 0
    %415 = vmatpush1.bf16.msra.mxu0 0
    %416 = vmatprep.subr.bf16.mxu0 0
    %417 = vmatpush1.bf16.msra.mxu0 0
    %418 = vmatprep.subr.bf16.mxu0 0
    %419 = vmatpush1.bf16.msra.mxu0 0
    %420 = vmatprep.subr.bf16.mxu0 0
    %421 = vmatpush1.bf16.msra.mxu0 %v325
    %422 = vmatprep.subr.bf16.mxu0 0
    %423 = vmatpush1.bf16.msra.mxu0 %v324
    %424 = vmatprep.subr.bf16.mxu0 0
    %425 = vmatpush2.bf16.msra.mxu0 0
    %426 = vmatprep.subr.bf16.mxu0 0
    %427 = vmatpush2.bf16.msra.mxu0 0
    %428 = vmatprep.subr.bf16.mxu0 0
    %429 = vmatpush2.bf16.msra.mxu0 0
    %430 = vmatprep.subr.bf16.mxu0 0
    %431 = vmatpush2.bf16.msra.mxu0 0
    %432 = vmatprep.subr.bf16.mxu0 0
    %433 = vmatpush2.bf16.msra.mxu0 0
    %434 = vmatprep.subr.bf16.mxu0 0
    %435 = vmatpush2.bf16.msra.mxu0 0
    %436 = vmatprep.subr.bf16.mxu0 0
    %437 = vmatpush2.bf16.msra.mxu0 0
    %438 = vmatprep.subr.bf16.mxu0 0
    %439 = vmatpush2.bf16.msra.mxu0 0
    %440 = vmatprep.mubr.bf16.mxu0 0
    %441 = vmatmul.mubr.bf16.gmra.mxu0 %v403
    %v442 = vpop.f32.mrf.mxu0
    %v443 = vadd.f32 %v387, %v442
    %v444 = vpop.f32.mrf.mxu0
    %v445 = vpop.f32.mrf.mxu0
    %v446 = vadd.f32 %v390, %v445
    %v447 = vpop.f32.mrf.mxu0
    %448 = vmatprep.mubr.bf16.mxu0 0
    %449 = vmatmul.mubr.bf16.gmra.mxu0 %v406
    %v450 = vpop.f32.mrf.mxu0
    %v451 = vadd.f32 %v395, %v450
    %v452 = vpop.f32.mrf.mxu0
    %v453 = vpop.f32.mrf.mxu0
    %v454 = vadd.f32 %v398, %v453
    %v455 = vpop.f32.mrf.mxu0
    %456 = vdwg.mxu0
    %v457 = vld [vmem:[%s2] sm:$0xff]
    %v458 = vld [vmem:[%s2 + $0x8] sm:$0xff]
    %v459 = vld [vmem:[%s2 + $0x10] sm:$0xff]
    %v460 = vld [vmem:[%s2 + $0x18] sm:$0xff]
    %462 = vset.pattern.permute.xlu0 0
    %463 = vperm.xlu0 %462, %v457
    %v464 = vpop.permute.xlu0 %463
    %467 = vset.pattern.permute.xlu0 0
    %468 = vperm.xlu0 %467, %v458
    %v469 = vpop.permute.xlu0 %468
    %472 = vset.pattern.permute.xlu0 0
    %473 = vperm.xlu0 %472, %v459
    %v474 = vpop.permute.xlu0 %473
    %477 = vset.pattern.permute.xlu0 0
    %478 = vperm.xlu0 %477, %v460
    %v479 = vpop.permute.xlu0 %478
    %v481 = vmul.f32 %v464, %v443
    %v482 = vmul.f32 %v469, %v446
    %v483 = vmul.f32 %v474, %v451
    %v484 = vmul.f32 %v479, %v454
    %v485 = vld [vmem:[%s9] sm:$0x1]
    %v487 = vlaneseq
    %v488 = vshrl.u32 %v487, 7
    %v489 = vsub.s32 0, %v488
    %v490 = vrot.slane %v485, %v489
    %v492 = vadd.f32 %v481, %v490
    %v493 = vadd.f32 %v482, %v490
    %v494 = vadd.f32 %v483, %v490
    %v495 = vadd.f32 %v484, %v490
    %v496 = vmax.f32 %v492, 0.0
    %v497 = vmax.f32 %v493, 0.0
    %v498 = vmax.f32 %v494, 0.0
    %v499 = vmax.f32 %v495, 0.0
    %v500 = vsel %vm192, 1, 0
    %v501 = vsel %vm193, 1, 0
    %v502 = vcvt.s32.f32 %v500
    %v503 = vcvt.s32.f32 %v501
    %v504 = vpack.c.bf16 %v503, %v502
    %v505 = vpack.c.bf16 %v497, %v496
    %v506 = vpack.c.bf16 %v499, %v498
    %v508 = vsel %vm401, %v504, 0
    %510 = vmatprep.subr.bf16.mxu0 0
    %511 = vmatpush1.bf16.msra.mxu0 0
    %512 = vmatprep.subr.bf16.mxu0 0
    %513 = vmatpush1.bf16.msra.mxu0 0
    %514 = vmatprep.subr.bf16.mxu0 0
    %515 = vmatpush1.bf16.msra.mxu0 0
    %516 = vmatprep.subr.bf16.mxu0 0
    %517 = vmatpush1.bf16.msra.mxu0 0
    %518 = vmatprep.subr.bf16.mxu0 0
    %519 = vmatpush1.bf16.msra.mxu0 0
    %520 = vmatprep.subr.bf16.mxu0 0
    %521 = vmatpush1.bf16.msra.mxu0 0
    %522 = vmatprep.subr.bf16.mxu0 0
    %523 = vmatpush1.bf16.msra.mxu0 %v506
    %524 = vmatprep.subr.bf16.mxu0 0
    %525 = vmatpush1.bf16.msra.mxu0 %v505
    %526 = vmatprep.subr.bf16.mxu0 0
    %527 = vmatpush2.bf16.msra.mxu0 0
    %528 = vmatprep.subr.bf16.mxu0 0
    %529 = vmatpush2.bf16.msra.mxu0 0
    %530 = vmatprep.subr.bf16.mxu0 0
    %531 = vmatpush2.bf16.msra.mxu0 0
    %532 = vmatprep.subr.bf16.mxu0 0
    %533 = vmatpush2.bf16.msra.mxu0 0
    %534 = vmatprep.subr.bf16.mxu0 0
    %535 = vmatpush2.bf16.msra.mxu0 0
    %536 = vmatprep.subr.bf16.mxu0 0
    %537 = vmatpush2.bf16.msra.mxu0 0
    %538 = vmatprep.subr.bf16.mxu0 0
    %539 = vmatpush2.bf16.msra.mxu0 0
    %540 = vmatprep.subr.bf16.mxu0 0
    %541 = vmatpush2.bf16.msra.mxu0 0
    %542 = vmatprep.mubr.bf16.mxu0 0
    %543 = vmatmul.mubr.bf16.gmra.mxu0 %v508
    %v544 = vpop.f32.mrf.mxu0
    %v545 = vadd.f32 0.0, %v544
    %v546 = vpop.f32.mrf.mxu0
    %v547 = vpop.f32.mrf.mxu0
    %v548 = vadd.f32 0.0, %v547
    %v549 = vpop.f32.mrf.mxu0
    %550 = vdwg.mxu0
    %v551 = vsel %vm401, %v502, 0.0
    %552 = vadd.xlane.f32.xlu0 %v551
    %v553 = vpop.xlane.xlu0 %552
    %v554 = vsel %vm401, %v503, 0.0
    %555 = vadd.xlane.f32.xlu0 %v554
    %v556 = vpop.xlane.xlu0 %555
    %vm557 = vcmp.gt.f32.partialorder %v553, 0.0
    %vm558 = vcmp.gt.f32.partialorder %v556, 0.0
    %v559 = vmax.f32 %v553, 1.0
    %v560 = vmax.f32 %v556, 1.0
    %v561 = vrcp.pop %v559
    %v562 = vrcp.pop %v560
    %v563 = vsel %vm557, %v561, 0.0
    %v564 = vsel %vm558, %v562, 0.0
    %v565 = vmul.f32 %v545, %v563
    %v566 = vmul.f32 %v548, %v564
    %v567 = vld [vmem:[#allocation8] sm:$0xff]
    %v568 = vld [vmem:[#allocation8 + $0x8] sm:$0xff]
    %v569 = vld [vmem:[#allocation8 + $0x10] sm:$0xff]
    %v570 = vld [vmem:[#allocation8 + $0x18] sm:$0xff]
    %v571 = vld [vmem:[#allocation8 + $0x20] sm:$0xff]
    %v572 = vld [vmem:[#allocation8 + $0x28] sm:$0xff]
    %v573 = vld [vmem:[#allocation8 + $0x30] sm:$0xff]
    %v574 = vld [vmem:[#allocation8 + $0x38] sm:$0xff]
    %v575 = vld [vmem:[#allocation8 + $0x40] sm:$0xff]
    %v576 = vld [vmem:[#allocation8 + $0x48] sm:$0xff]
    %v577 = vld [vmem:[#allocation8 + $0x50] sm:$0xff]
    %v578 = vld [vmem:[#allocation8 + $0x58] sm:$0xff]
    %v579 = vld [vmem:[#allocation8 + $0x60] sm:$0xff]
    %v580 = vld [vmem:[#allocation8 + $0x68] sm:$0xff]
    %v581 = vld [vmem:[#allocation8 + $0x70] sm:$0xff]
    %v582 = vld [vmem:[#allocation8 + $0x78] sm:$0xff]
    %v583 = vpack.c.bf16 %v568, %v567
    %v584 = vpack.c.bf16 %v570, %v569
    %v585 = vpack.c.bf16 %v572, %v571
    %v586 = vpack.c.bf16 %v574, %v573
    %v587 = vpack.c.bf16 %v576, %v575
    %v588 = vpack.c.bf16 %v578, %v577
    %v589 = vpack.c.bf16 %v580, %v579
    %v590 = vpack.c.bf16 %v582, %v581
    %v591 = vpack.c.bf16 %v566, %v565
    %v592 = vld [vmem:[#allocation10] sm:$0xff]
    %v593 = vld [vmem:[#allocation10 + $0x8] sm:$0xff]
    %v594 = vld [vmem:[#allocation10 + $0x10] sm:$0xff]
    %v595 = vld [vmem:[#allocation10 + $0x18] sm:$0xff]
    %v596 = vld [vmem:[#allocation10 + $0x20] sm:$0xff]
    %v597 = vld [vmem:[#allocation10 + $0x28] sm:$0xff]
    %v598 = vld [vmem:[#allocation10 + $0x30] sm:$0xff]
    %v599 = vld [vmem:[#allocation10 + $0x38] sm:$0xff]
    %v600 = vld [vmem:[#allocation10 + $0x40] sm:$0xff]
    %v601 = vld [vmem:[#allocation10 + $0x48] sm:$0xff]
    %v602 = vld [vmem:[#allocation10 + $0x50] sm:$0xff]
    %v603 = vld [vmem:[#allocation10 + $0x58] sm:$0xff]
    %v604 = vld [vmem:[#allocation10 + $0x60] sm:$0xff]
    %v605 = vld [vmem:[#allocation10 + $0x68] sm:$0xff]
    %v606 = vld [vmem:[#allocation10 + $0x70] sm:$0xff]
    %v607 = vld [vmem:[#allocation10 + $0x78] sm:$0xff]
    %v608 = vpack.c.bf16 %v593, %v592
    %v609 = vpack.c.bf16 %v595, %v594
    %v610 = vpack.c.bf16 %v597, %v596
    %v611 = vpack.c.bf16 %v599, %v598
    %v612 = vpack.c.bf16 %v601, %v600
    %v613 = vpack.c.bf16 %v603, %v602
    %v614 = vpack.c.bf16 %v605, %v604
    %v615 = vpack.c.bf16 %v607, %v606
    %616 = vmatprep.subr.bf16.mxu0 0
    %617 = vmatpush1.bf16.msra.mxu0 %v615
    %618 = vmatprep.subr.bf16.mxu0 0
    %619 = vmatpush1.bf16.msra.mxu0 %v614
    %620 = vmatprep.subr.bf16.mxu0 0
    %621 = vmatpush1.bf16.msra.mxu0 %v613
    %622 = vmatprep.subr.bf16.mxu0 0
    %623 = vmatpush1.bf16.msra.mxu0 %v612
    %624 = vmatprep.subr.bf16.mxu0 0
    %625 = vmatpush1.bf16.msra.mxu0 %v611
    %626 = vmatprep.subr.bf16.mxu0 0
    %627 = vmatpush1.bf16.msra.mxu0 %v610
    %628 = vmatprep.subr.bf16.mxu0 0
    %629 = vmatpush1.bf16.msra.mxu0 %v609
    %630 = vmatprep.subr.bf16.mxu0 0
    %631 = vmatpush1.bf16.msra.mxu0 %v608
    %632 = vmatprep.subr.bf16.mxu0 0
    %633 = vmatpush2.bf16.msra.mxu0 0
    %634 = vmatprep.subr.bf16.mxu0 0
    %635 = vmatpush2.bf16.msra.mxu0 0
    %636 = vmatprep.subr.bf16.mxu0 0
    %637 = vmatpush2.bf16.msra.mxu0 0
    %638 = vmatprep.subr.bf16.mxu0 0
    %639 = vmatpush2.bf16.msra.mxu0 0
    %640 = vmatprep.subr.bf16.mxu0 0
    %641 = vmatpush2.bf16.msra.mxu0 0
    %642 = vmatprep.subr.bf16.mxu0 0
    %643 = vmatpush2.bf16.msra.mxu0 0
    %644 = vmatprep.subr.bf16.mxu0 0
    %645 = vmatpush2.bf16.msra.mxu0 0
    %646 = vmatprep.subr.bf16.mxu0 0
    %647 = vmatpush2.bf16.msra.mxu0 0
    %648 = vmatprep.mubr.bf16.mxu0 0
    %649 = vmatmul.mubr.bf16.gmra.mxu0 %v591
    %v650 = vpop.f32.mrf.mxu0
    %v651 = vadd.f32 0.0, %v650
    %v652 = vpop.f32.mrf.mxu0
    %v653 = vpop.f32.mrf.mxu0
    %v654 = vadd.f32 0.0, %v653
    %v655 = vpop.f32.mrf.mxu0
    %656 = vdwg.mxu0
    %657 = vmatprep.subr.bf16.mxu0 0
    %658 = vmatpush1.bf16.msra.mxu0 %v590
    %659 = vmatprep.subr.bf16.mxu0 0
    %660 = vmatpush1.bf16.msra.mxu0 %v589
    %661 = vmatprep.subr.bf16.mxu0 0
    %662 = vmatpush1.bf16.msra.mxu0 %v588
    %663 = vmatprep.subr.bf16.mxu0 0
    %664 = vmatpush1.bf16.msra.mxu0 %v587
    %665 = vmatprep.subr.bf16.mxu0 0
    %666 = vmatpush1.bf16.msra.mxu0 %v586
    %667 = vmatprep.subr.bf16.mxu0 0
    %668 = vmatpush1.bf16.msra.mxu0 %v585
    %669 = vmatprep.subr.bf16.mxu0 0
    %670 = vmatpush1.bf16.msra.mxu0 %v584
    %671 = vmatprep.subr.bf16.mxu0 0
    %672 = vmatpush1.bf16.msra.mxu0 %v583
    %673 = vmatprep.subr.bf16.mxu0 0
    %674 = vmatpush2.bf16.msra.mxu0 0
    %675 = vmatprep.subr.bf16.mxu0 0
    %676 = vmatpush2.bf16.msra.mxu0 0
    %677 = vmatprep.subr.bf16.mxu0 0
    %678 = vmatpush2.bf16.msra.mxu0 0
    %679 = vmatprep.subr.bf16.mxu0 0
    %680 = vmatpush2.bf16.msra.mxu0 0
    %681 = vmatprep.subr.bf16.mxu0 0
    %682 = vmatpush2.bf16.msra.mxu0 0
    %683 = vmatprep.subr.bf16.mxu0 0
    %684 = vmatpush2.bf16.msra.mxu0 0
    %685 = vmatprep.subr.bf16.mxu0 0
    %686 = vmatpush2.bf16.msra.mxu0 0
    %687 = vmatprep.subr.bf16.mxu0 0
    %688 = vmatpush2.bf16.msra.mxu0 0
    %689 = vmatprep.mubr.bf16.mxu0 0
    %690 = vmatmul.mubr.bf16.gmra.mxu0 %v123
    %v691 = vpop.f32.mrf.mxu0
    %v692 = vadd.f32 %v651, %v691
    %v693 = vpop.f32.mrf.mxu0
    %v694 = vpop.f32.mrf.mxu0
    %v695 = vadd.f32 %v654, %v694
    %v696 = vpop.f32.mrf.mxu0
    %697 = vdwg.mxu0
    %v698 = vld [vmem:[%s12] sm:$0x1]
    %v700 = vlaneseq
    %v701 = vshrl.u32 %v700, 7
    %v702 = vsub.s32 0, %v701
    %v703 = vrot.slane %v698, %v702
    %v705 = vadd.f32 %v692, %v703
    %v706 = vadd.f32 %v695, %v703
    %v707 = vmax.f32 %v705, 0.0
    %v708 = vmax.f32 %v706, 0.0
    %v709 = vadd.f32 %v707, %v117
    %v710 = vadd.f32 %v708, %v118
    %711 = vst [vmem:[#allocation11] sm:$0xff] %v709
    %712 = vst [vmem:[#allocation11 + $0x8] sm:$0xff] %v710
    %v713 = vadd.f32 %v496, %v119
    %v714 = vadd.f32 %v497, %v120
    %v715 = vadd.f32 %v498, %v121
    %v716 = vadd.f32 %v499, %v122
    %717 = vst [vmem:[#allocation12] sm:$0xff] %v713
    %718 = vst [vmem:[#allocation12 + $0x8] sm:$0xff] %v714
    %719 = vst [vmem:[#allocation12 + $0x10] sm:$0xff] %v715
    %720 = vst [vmem:[#allocation12 + $0x18] sm:$0xff] %v716
    // Predicated region
    $region74: #{tpu_custom_call.1} parent=1 // pred_check
      _
    $region75: #{tpu_custom_call.1} parent=1 // pred_check_branch
      %722 = sbr.rel (0) target = $region77
    $region76: #{tpu_custom_call.1} parent=1 // pred_region
      %s724 = ssub.s32 256, 256
      %725 = vsyncadd [#allocation4], %s724
      %s726 = sshll.u32 [#allocation11], 4
      %s727 = int_to_ptr.vmem [resolvable:$true] %s726
      %732 = dma.vmem_to_hbm [thread:$0]  %s727, 256, %s13, [#allocation4], 128, 128, 8
    $region77: #{tpu_custom_call.1} parent=1 // pred_fallthru
      _
    // Predicated region
    $region78: #{tpu_custom_call.1} parent=1 // pred_check
      _
    $region79: #{tpu_custom_call.1} parent=1 // pred_check_branch
      %734 = sbr.rel (0) target = $region81
    $region80: #{tpu_custom_call.1} parent=1 // pred_region
      %s736 = ssub.s32 512, 512
      %737 = vsyncadd [#allocation13], %s736
      %s738 = sshll.u32 [#allocation12], 4
      %s739 = int_to_ptr.vmem [resolvable:$true] %s738
      %744 = dma.vmem_to_hbm [thread:$0]  %s739, 512, %s14, [#allocation13], 128, 128, 8
    $region81: #{tpu_custom_call.1} parent=1 // pred_fallthru
      _
    // Predicated region
    $region82: #{tpu_custom_call.1} parent=1 // pred_check
      _
    $region83: #{tpu_custom_call.1} parent=1 // pred_check_branch
      %746 = sbr.rel (0) target = $region85
    $region84: #{tpu_custom_call.1} parent=1 // pred_region
      %747 = dma.done [#allocation4], 256
    $region85: #{tpu_custom_call.1} parent=1 // pred_fallthru
      _
    // Predicated region
    $region86: #{tpu_custom_call.1} parent=1 // pred_check
      _
    $region87: #{tpu_custom_call.1} parent=1 // pred_check_branch
      %749 = sbr.rel (0) target = $region89
    $region88: #{tpu_custom_call.1} parent=1 // pred_region
      %750 = dma.done [#allocation13], 512
    $region89: #{tpu_custom_call.1} parent=1 // pred_fallthru
      _
    %751 = vsyncpa [#allocation3], 1
    %752 = vsyncpa [#allocation6], 1
    %753 = vsyncpa [#allocation9], 1
    %754 = vsyncpa [#allocation4], 1
    %755 = vsyncpa [#allocation13], 1

</llo_original>
